<compile_context>
chip_gen: v7x
topology: tpu7x:2x2x1
jax: 0.10.0
libtpu: 0.0.40
codegen_flags: <defaults>
</compile_context>

<pallas_src>
import functools
import math

import jax
import jax.numpy as jnp
from jax.experimental import pallas as pl
from jax.experimental.pallas import tpu as pltpu


# ---------------------------------------------------------------------------
# Kernel bodies
# ---------------------------------------------------------------------------
def _gcn_ax_then_w_kernel(a_ref, x_ref, w_ref, b_ref, o_ref, acc_ref,
                          *, compute_dtype):
    """Order (A @ X) @ W  (used when F_in <= F_out).

    acc[(tm, F_in)] += A_blk[(tm, tk)] @ X_blk[(tk, F_in)]  over the k axis;
    on the last k step:  out = acc @ W + bias.
    """
    k = pl.program_id(1)

    @pl.when(k == 0)
    def _():
        acc_ref[...] = jnp.zeros_like(acc_ref)

    acc_ref[...] += jnp.dot(
        a_ref[...].astype(compute_dtype),
        x_ref[...].astype(compute_dtype),
        preferred_element_type=jnp.float32,
    )

    @pl.when(k == pl.num_programs(1) - 1)
    def _():
        out = jnp.dot(
            acc_ref[...].astype(compute_dtype),
            w_ref[...].astype(compute_dtype),
            preferred_element_type=jnp.float32,
        )
        o_ref[...] = (out + b_ref[...]).astype(o_ref.dtype)


def _gcn_a_support_kernel(a_ref, s_ref, b_ref, o_ref, acc_ref,
                          *, compute_dtype):
    """Order A @ support  (used when F_out < F_in; support = X @ W precomputed).

    acc[(tm, F_out)] += A_blk[(tm, tk)] @ S_blk[(tk, F_out)]  over the k axis;
    on the last k step:  out = acc + bias.
    """
    k = pl.program_id(1)

    @pl.when(k == 0)
    def _():
        acc_ref[...] = jnp.zeros_like(acc_ref)

    acc_ref[...] += jnp.dot(
        a_ref[...].astype(compute_dtype),
        s_ref[...].astype(compute_dtype),
        preferred_element_type=jnp.float32,
    )

    @pl.when(k == pl.num_programs(1) - 1)
    def _():
        o_ref[...] = (acc_ref[...] + b_ref[...]).astype(o_ref.dtype)


# ---------------------------------------------------------------------------
# Wrapper
# ---------------------------------------------------------------------------
def gcn_forward(adj_norm, x, weight, bias, *, tm=None, tk=None,
                compute_dtype=jnp.bfloat16):
    """out = adj_norm @ (x @ weight) + bias, fused in one Pallas kernel."""
    N, F_in = x.shape
    F_in2, F_out = weight.shape
    assert F_in == F_in2, "weight shape mismatch"
    assert adj_norm.shape == (N, N), "adjacency must be [N, N]"
    assert bias.shape == (F_out,), "bias shape mismatch"

    # Tile auto-selection:
    #   tm = 128 keeps >= 2 "parallel" row blocks at small N (both v7x cores);
    #   tm = 256 at larger N fills the 256x256 MXUs on v6e/v7x.
    if tm is None:
        tm = 256 if N >= 512 else 128
    if tk is None:
        tk = 256 if N >= 256 else 128

    # Pad the node dimension only if ragged w.r.t. the tiles (zero rows/cols
    # are exact no-ops for the matmuls; padded output rows are sliced off).
    blk = math.lcm(tm, tk)
    n_pad = (-N) % blk
    if n_pad:
        adj_norm = jnp.pad(adj_norm, ((0, n_pad), (0, n_pad)))
        x = jnp.pad(x, ((0, n_pad), (0, 0)))
    Np = N + n_pad
    assert Np % tm == 0 and Np % tk == 0

    # Everything stays float32 in HBM; bf16 casts happen per-block inside the
    # kernel (no standalone convert traffic on the N^2 array).
    a_f32 = adj_norm.astype(jnp.float32)
    b_f32 = bias.reshape(1, F_out).astype(jnp.float32)

    grid = (Np // tm, Np // tk)
    n_row_blocks = Np // tm

    if F_out < F_in:
        # Narrow output: tiny support = X @ W once, stream A against it.
        support = jnp.dot(x.astype(jnp.float32), weight.astype(jnp.float32))
        kernel = functools.partial(_gcn_a_support_kernel,
                                   compute_dtype=compute_dtype)
        in_arrays = (a_f32, support, b_f32)
        in_specs = [
            pl.BlockSpec((tm, tk), lambda i, k: (i, k)),        # A row/col block
            pl.BlockSpec((tk, F_out), lambda i, k: (k, 0)),     # support block
            pl.BlockSpec((1, F_out), lambda i, k: (0, 0)),      # bias (resident)
        ]
        acc_shape = (tm, F_out)
        flops = 2 * Np * Np * F_out + 2 * Np * F_in * F_out
        bytes_accessed = (
            Np * Np * 4                              # A_hat (read once)
            + n_row_blocks * Np * F_out * 4          # support, re-read per row block
            + F_out * 4                              # bias
            + Np * F_out * 4                         # output
        )
    else:
        kernel = functools.partial(_gcn_ax_then_w_kernel,
                                   compute_dtype=compute_dtype)
        in_arrays = (a_f32, x.astype(jnp.float32),
                     weight.astype(jnp.float32), b_f32)
        in_specs = [
            pl.BlockSpec((tm, tk), lambda i, k: (i, k)),        # A row/col block
            pl.BlockSpec((tk, F_in), lambda i, k: (k, 0)),      # X block
            pl.BlockSpec((F_in, F_out), lambda i, k: (0, 0)),   # W (resident)
            pl.BlockSpec((1, F_out), lambda i, k: (0, 0)),      # bias (resident)
        ]
        acc_shape = (tm, F_in)
        flops = 2 * Np * Np * F_in + 2 * Np * F_in * F_out
        bytes_accessed = (
            Np * Np * 4                              # A_hat (read once)
            + n_row_blocks * Np * F_in * 4           # X, re-read per row block
            + F_in * F_out * 4                       # W
            + F_out * 4                              # bias
            + Np * F_out * 4                         # output
        )

    cost = pl.CostEstimate(flops=flops, transcendentals=0,
                           bytes_accessed=bytes_accessed)

    out = pl.pallas_call(
        kernel,
        out_shape=jax.ShapeDtypeStruct((Np, F_out), jnp.float32),
        grid_spec=pltpu.PrefetchScalarGridSpec(
            num_scalar_prefetch=0,
            grid=grid,
            in_specs=in_specs,
            out_specs=pl.BlockSpec((tm, F_out), lambda i, k: (i, 0)),
            scratch_shapes=[pltpu.VMEM(acc_shape, jnp.float32)],
        ),
        compiler_params=pltpu.CompilerParams(
            dimension_semantics=("parallel", "arbitrary"),
            vmem_limit_bytes=32 * 1024 * 1024,
        ),
        cost_estimate=cost,
    )(*in_arrays)

    if n_pad:
        out = out[:N]
    return out


# ---------------------------------------------------------------------------
# GraphConvolution forward (glue)
# ---------------------------------------------------------------------------
def graph_convolution_forward(adj_norm, x, weight, bias):
    # TODO(synk): dropout / residual / norm / activation branches are disabled
    # by the module defaults (dropout=0, residual=False, norm=None, act=None)
    # and therefore not emitted here.
    return gcn_forward(adj_norm, x, weight, bias)


def make_params(key, in_features, out_features):
    # Matches reset_parameters(): weight ~ U(-stdv, stdv), stdv = 1/sqrt(out_features);
    # bias zero-initialized.
    stdv = 1.0 / math.sqrt(out_features)
    weight = jax.random.uniform(
        key, (in_features, out_features), minval=-stdv, maxval=stdv,
        dtype=jnp.float32,
    )
    bias = jnp.zeros((out_features,), dtype=jnp.float32)
    return weight, bias


def make_normalized_adj(key, num_nodes):
    # Deterministic synthetic graph: random dense edges -> symmetric, add self
    # loops, symmetric-normalize: A_hat = D^-1/2 (A + I) D^-1/2.
    logits = jax.random.uniform(key, (num_nodes, num_nodes))
    a = (logits < 0.05).astype(jnp.float32)
    a = jnp.maximum(a, a.T)
    a = a + jnp.eye(num_nodes, dtype=jnp.float32)
    deg = jnp.sum(a, axis=1)
    d_inv_sqrt = 1.0 / jnp.sqrt(deg)
    return a * d_inv_sqrt[:, None] * d_inv_sqrt[None, :]


if __name__ == "__main__":
    N_NODES = 256       # number of graph nodes
    IN_FEATURES = 128
    OUT_FEATURES = 128

    key = jax.random.PRNGKey(0)
    k_x, k_w, k_adj, k_b = jax.random.split(key, 4)

    x = jax.random.normal(k_x, (N_NODES, IN_FEATURES), dtype=jnp.float32)
    weight, bias = make_params(k_w, IN_FEATURES, OUT_FEATURES)
    adj_norm = make_normalized_adj(k_adj, N_NODES)

    # 1) Module-default parameters (zero bias per reset_parameters()).
    out = graph_convolution_forward(adj_norm, x, weight, bias)
    out = jax.block_until_ready(out)
    ref = adj_norm @ (x @ weight) + bias[None, :]
    assert out.shape == (N_NODES, OUT_FEATURES)
    assert jnp.allclose(out, ref, atol=5e-2, rtol=5e-2), (
        f"max abs err = {float(jnp.max(jnp.abs(out - ref)))}"
    )

    # 2) Non-zero bias (a trained layer's bias is arbitrary) to actually
    #    exercise the fused bias-add path.
    bias_nz = 0.1 * jax.random.normal(k_b, (OUT_FEATURES,), dtype=jnp.float32)
    out_nz = jax.block_until_ready(
        graph_convolution_forward(adj_norm, x, weight, bias_nz))
    ref_nz = adj_norm @ (x @ weight) + bias_nz[None, :]
    assert jnp.allclose(out_nz, ref_nz, atol=5e-2, rtol=5e-2), (
        f"max abs err = {float(jnp.max(jnp.abs(out_nz - ref_nz)))}"
    )

    # 3) Narrow-output layer (F_out < F_in) -> exercises the A @ (X @ W)
    #    ordering path.
    w2, b2 = make_params(k_w, IN_FEATURES, 64)
    out2 = jax.block_until_ready(graph_convolution_forward(adj_norm, x, w2, b2))
    ref2 = adj_norm @ (x @ w2) + b2[None, :]
    assert out2.shape == (N_NODES, 64)
    assert jnp.allclose(out2, ref2, atol=5e-2, rtol=5e-2), (
        f"max abs err = {float(jnp.max(jnp.abs(out2 - ref2)))}"
    )

    print("KERNEL_OK")
</pallas_src>

<mosaic_0001>
module attributes {stable_mosaic.version = 11 : i64} {
  func.func @_gcn_ax_then_w_kernel(%arg0: i32, %arg1: i32, %arg2: memref<128x256xf32, #tpu.memory_space<vmem>>, %arg3: memref<256x128xf32, #tpu.memory_space<vmem>>, %arg4: memref<128x128xf32, #tpu.memory_space<vmem>>, %arg5: memref<1x128xf32, #tpu.memory_space<vmem>>, %arg6: memref<128x128xf32, #tpu.memory_space<vmem>>, %arg7: memref<128x128xf32, #tpu.memory_space<vmem>>) attributes {dimension_semantics = [#tpu.dimension_semantics<parallel>, #tpu.dimension_semantics<arbitrary>], iteration_bounds = array<i64: 2, 1>, scalar_prefetch = 0 : i64, scratch_operands = 1 : i64, tpu.core_type = #tpu.core_type<tc>, window_params = [{transform_indices = @transform_0, window_bounds = array<i64: 128, 256>}, {transform_indices = @transform_1, window_bounds = array<i64: 256, 128>}, {pipeline_mode = #tpu.pipeline_mode<synchronous>, transform_indices = @transform_2, window_bounds = array<i64: 128, 128>}, {pipeline_mode = #tpu.pipeline_mode<synchronous>, transform_indices = @transform_3, window_bounds = array<i64: 1, 128>}, {transform_indices = @transform_4, window_bounds = array<i64: 128, 128>}]} {
    %c0_i32 = arith.constant 0 : i32
    %0 = arith.cmpi eq, %arg1, %c0_i32 : i32
    %1 = arith.extui %0 : i1 to i32
    %c0_i32_0 = arith.constant 0 : i32
    %2 = arith.cmpi ne, %1, %c0_i32_0 : i32
    scf.if %2 {
      %cst_10 = arith.constant 0.000000e+00 : f32
      %14 = vector.broadcast %cst_10 : f32 to vector<128x128xf32>
      %c0_11 = arith.constant 0 : index
      %c0_12 = arith.constant 0 : index
      %15 = vector.load %arg7[%c0_11, %c0_12] : memref<128x128xf32, #tpu.memory_space<vmem>>, vector<128x128xf32>
      tpu.vector_store %arg7[%c0_11, %c0_12], %14 {strides = array<i32>} : memref<128x128xf32, #tpu.memory_space<vmem>>, vector<128x128xf32>,
    } else {
    }
    %c0 = arith.constant 0 : index
    %c0_1 = arith.constant 0 : index
    %3 = vector.load %arg7[%c0, %c0_1] : memref<128x128xf32, #tpu.memory_space<vmem>>, vector<128x128xf32>
    %c0_2 = arith.constant 0 : index
    %c0_3 = arith.constant 0 : index
    %4 = vector.load %arg2[%c0_2, %c0_3] : memref<128x256xf32, #tpu.memory_space<vmem>>, vector<128x256xf32>
    %5 = arith.truncf %4 : vector<128x256xf32> to vector<128x256xbf16>
    %c0_4 = arith.constant 0 : index
    %c0_5 = arith.constant 0 : index
    %6 = vector.load %arg3[%c0_4, %c0_5] : memref<256x128xf32, #tpu.memory_space<vmem>>, vector<256x128xf32>
    %7 = arith.truncf %6 : vector<256x128xf32> to vector<256x128xbf16>
    %cst = arith.constant dense<0.000000e+00> : vector<128x128xf32>
    %8 = tpu.matmul %5, %7, %cst {dimension_numbers = #tpu.dot_dimension_numbers<[1], [0], [0], [1], [0, 0, 1, 1], [], []>} : vector<128x256xbf16>, vector<256x128xbf16>, vector<128x128xf32> -> vector<128x128xf32>
    %9 = arith.addf %3, %8 : vector<128x128xf32>
    %c0_6 = arith.constant 0 : index
    %c0_7 = arith.constant 0 : index
    %10 = vector.load %arg7[%c0_6, %c0_7] : memref<128x128xf32, #tpu.memory_space<vmem>>, vector<128x128xf32>
    tpu.vector_store %arg7[%c0_6, %c0_7], %9 {strides = array<i32>} : memref<128x128xf32, #tpu.memory_space<vmem>>, vector<128x128xf32>,
    %c0_i32_8 = arith.constant 0 : i32
    %11 = arith.cmpi eq, %arg1, %c0_i32_8 : i32
    %12 = arith.extui %11 : i1 to i32
    %c0_i32_9 = arith.constant 0 : i32
    %13 = arith.cmpi ne, %12, %c0_i32_9 : i32
    scf.if %13 {
      %c0_10 = arith.constant 0 : index
      %c0_11 = arith.constant 0 : index
      %14 = vector.load %arg7[%c0_10, %c0_11] : memref<128x128xf32, #tpu.memory_space<vmem>>, vector<128x128xf32>
      %15 = arith.truncf %14 : vector<128x128xf32> to vector<128x128xbf16>
      %c0_12 = arith.constant 0 : index
      %c0_13 = arith.constant 0 : index
      %16 = vector.load %arg4[%c0_12, %c0_13] : memref<128x128xf32, #tpu.memory_space<vmem>>, vector<128x128xf32>
      %17 = arith.truncf %16 : vector<128x128xf32> to vector<128x128xbf16>
      %cst_14 = arith.constant dense<0.000000e+00> : vector<128x128xf32>
      %18 = tpu.matmul %15, %17, %cst_14 {dimension_numbers = #tpu.dot_dimension_numbers<[1], [0], [0], [1], [0, 0, 1, 1], [], []>} : vector<128x128xbf16>, vector<128x128xbf16>, vector<128x128xf32> -> vector<128x128xf32>
      %c0_15 = arith.constant 0 : index
      %c0_16 = arith.constant 0 : index
      %19 = vector.load %arg5[%c0_15, %c0_16] : memref<1x128xf32, #tpu.memory_space<vmem>>, vector<1x128xf32>
      %20 = vector.broadcast %19 : vector<1x128xf32> to vector<128x128xf32>
      %21 = arith.addf %18, %20 : vector<128x128xf32>
      %c0_17 = arith.constant 0 : index
      %c0_18 = arith.constant 0 : index
      %22 = vector.load %arg6[%c0_17, %c0_18] : memref<128x128xf32, #tpu.memory_space<vmem>>, vector<128x128xf32>
      tpu.vector_store %arg6[%c0_17, %c0_18], %21 {strides = array<i32>} : memref<128x128xf32, #tpu.memory_space<vmem>>, vector<128x128xf32>,
    } else {
    }
    return
  }
  func.func @transform_0(%arg0: i32, %arg1: i32) -> (i32, i32) {
    %c0_i32 = arith.constant 0 : i32
    return %arg0, %arg1 : i32, i32
  }
  func.func @transform_1(%arg0: i32, %arg1: i32) -> (i32, i32) {
    %c0_i32 = arith.constant 0 : i32
    %c0_i32_0 = arith.constant 0 : i32
    return %arg1, %c0_i32 : i32, i32
  }
  func.func @transform_2(%arg0: i32, %arg1: i32) -> (i32, i32) {
    %c0_i32 = arith.constant 0 : i32
    %c0_i32_0 = arith.constant 0 : i32
    %c0_i32_1 = arith.constant 0 : i32
    return %c0_i32, %c0_i32_0 : i32, i32
  }
  func.func @transform_3(%arg0: i32, %arg1: i32) -> (i32, i32) {
    %c0_i32 = arith.constant 0 : i32
    %c0_i32_0 = arith.constant 0 : i32
    %c0_i32_1 = arith.constant 0 : i32
    return %c0_i32, %c0_i32_0 : i32, i32
  }
  func.func @transform_4(%arg0: i32, %arg1: i32) -> (i32, i32) {
    %c0_i32 = arith.constant 0 : i32
    %c0_i32_0 = arith.constant 0 : i32
    return %arg0, %c0_i32 : i32, i32
  }
}

</mosaic_0001>

<llo_original>
// kernel: tpu_custom_call.1
$region0: #{tpu_custom_call.1}
  #allocation0 [shape = 'u32[]', space=smem, size = 0x4, offset = 0x4, fixed_abs, tag = 'smem constant byte address 0x4 - core index']
  #allocation1 [shape = 'u32[144,128]{1,0:T(1,128)}', space=vmem, size = 0x12000, scoped, tag = 'internal scratch']
  #allocation2 [shape = 'f32[128,128]{1,0:T(8,128)}', space=vmem, size = 0x10000, scoped, tag = 'scratch operand']
  %s0 = inlined_call_operand.hbm [shape: f32[256,256], index: 0, kind: input, shape index: {}]
  %s1 = inlined_call_operand.hbm [shape: f32[256,128], index: 1, kind: input, shape index: {}]
  %s2 = inlined_call_operand.hbm [shape: f32[128,128], index: 2, kind: input, shape index: {}]
  %s3 = inlined_call_operand.vmem [shape: f32[1,128], index: 3, kind: input, shape index: {}]
  %s4 = inlined_call_operand.hbm [shape: f32[256,128], index: 4, kind: output, shape index: {}]
  %s5 = sld [smem:[#allocation0]]
  $region69: #{tpu_custom_call.1} parent=0
    _
  %s7 = ssub.s32 1, %s5
  %s8 = scalar_select 0, %s7, %s5
  $region1: #{tpu_custom_call.1} parent=0
    #allocation3 [shape = 'u8[262144]{0}', space=vmem, size = 0x40000, scoped, tag = 'input window, operand 0']
    #allocation4 [shape = 's32[2]{0}', space=sflag, size = 0x8, scoped, tag = 'scoped memory for tpu_custom_call.1']
    #allocation5 [shape = 's32[2]{0}', space=sflag, size = 0x8, scoped, tag = 'scoped memory for tpu_custom_call.1']
    #allocation6 [shape = 'u8[131072]{0}', space=vmem, size = 0x20000, scoped, tag = 'input window, operand 1, single buffered']
    #allocation7 [shape = 's32[1]{0}', space=sflag, size = 0x4, scoped, tag = 'scoped memory for tpu_custom_call.1']
    #allocation8 [shape = 'u8[65536]{0}', space=vmem, size = 0x10000, scoped, tag = 'input window, operand 2, single buffered']
    #allocation9 [shape = 'u8[131072]{0}', space=vmem, size = 0x20000, scoped, tag = 'output window, operand 0']
    %9 = vsyncpa [#allocation4], 0
    %s10 = scalar_lea.sflag [#allocation4], 1
    %11 = vsyncpa %s10, 0
    %12 = vsyncpa [#allocation7], 0
    %13 = vsyncpa [#allocation5], 0
    %s14 = scalar_lea.sflag [#allocation5], 1
    %15 = vsyncpa %s14, 0
    loop: start=0, step=1, limit=4
    $region2: #{tpu_custom_call.1} parent=1 // loop_pre_header
      _
    $region3: #{tpu_custom_call.1} parent=1 // loop_header
      %s17 = sphi 0, %s21
      %p18 = scmp.ge.s32.totalorder %s17, 4
      %s24 = sphi 0, %s36
      %s25 = sphi 0, %s32
      %s26 = sphi 0, %s24
      %s27 = sphi 0, %s25
      %s28 = sphi 0, %s26
      %s29 = sphi 0, %s27
      %s41 = sphi 0, %s43
      %s44 = sphi 0, %s41
      %s45 = sphi 0, %s44
      %s61 = sphi 0, %s45
      %s67 = sphi 0, %s69
      %s70 = sphi 0, %s67
      %s71 = sphi 0, %s70
      %s87 = sphi 0, %s71
      %s91 = sphi 0, %s91
      %s93 = sphi 0, %s91
      %s94 = sphi 0, %s93
      %s108 = sphi 0, %s94
      %s112 = sphi 0, %s112
      %s114 = sphi 0, %s112
      %s115 = sphi 0, %s114
      %s129 = sphi 0, %s115
      %s135 = sphi 0, %s137
      %s138 = sphi 0, %s135
      %s139 = sphi 0, %s138
      %s155 = sphi 0, %s139
    $region4: #{tpu_custom_call.1} parent=1 // loop_header_branch
      %20 = sbr.rel (%p18) target = $region8
    $region5: #{tpu_custom_call.1} parent=1 // loop_body
      %s22 = ssub.s32 %s17, 1
      %s23 = ssub.s32 %s17, 2
      %s30 = sadd.s32 1, %s25
      %p31 = scmp.ge.s32.totalorder %s30, 1
      %s32 = scalar_select %p31, 0, %s30
      %s33 = sadd.s32 1, %s24
      %s34 = scalar_select %p31, %s33, %s24
      %p35 = scmp.ge.s32.totalorder %s34, 2
      %s36 = scalar_select %p35, 0, %s34
      %s37 = ssub.s32 %s24, %s36
      %s38 = ssub.s32 %s25, %s32
      %s39 = sor.u32 %s37, %s38
      %p40 = scmp.eq.s32.totalorder %s39, 0
      %s42 = sadd.s32 %s41, 1
      %s43 = scalar_select %p40, %s41, %s42
      %p46 = pneg %p40
      %p47 = scmp.eq.s32.totalorder %s17, 1
      %p48 = por %p46, %p47
      %p49 = scmp.ne.s32.totalorder %s41, %s44
      %p50 = scmp.eq.s32.totalorder %s17, 0
      %p51 = por %p49, %p50
      %p52 = scmp.ne.s32.totalorder %s41, %s44
      %p53 = scmp.eq.s32.totalorder %s22, 1
      %p54 = por %p52, %p53
      %p55 = scmp.ne.s32.totalorder %s44, %s45
      %p56 = scmp.eq.s32.totalorder %s22, 0
      %p57 = por %p55, %p56
      %p58 = scmp.ne.s32.totalorder %s44, %s45
      %p59 = scmp.eq.s32.totalorder %s23, 1
      %p60 = por %p58, %p59
      %p62 = scmp.ne.s32.totalorder %s45, %s61
      %p63 = scmp.eq.s32.totalorder %s23, 0
      %p64 = por %p62, %p63
      %s65 = ssub.s32 %s25, %s32
      %p66 = scmp.eq.s32.totalorder %s65, 0
      %s68 = sadd.s32 %s67, 1
      %s69 = scalar_select %p66, %s67, %s68
      %p72 = pneg %p66
      %p73 = scmp.eq.s32.totalorder %s17, 1
      %p74 = por %p72, %p73
      %p75 = scmp.ne.s32.totalorder %s67, %s70
      %p76 = scmp.eq.s32.totalorder %s17, 0
      %p77 = por %p75, %p76
      %p78 = scmp.ne.s32.totalorder %s67, %s70
      %p79 = scmp.eq.s32.totalorder %s22, 1
      %p80 = por %p78, %p79
      %p81 = scmp.ne.s32.totalorder %s70, %s71
      %p82 = scmp.eq.s32.totalorder %s22, 0
      %p83 = por %p81, %p82
      %p84 = scmp.ne.s32.totalorder %s70, %s71
      %p85 = scmp.eq.s32.totalorder %s23, 1
      %p86 = por %p84, %p85
      %p88 = scmp.ne.s32.totalorder %s71, %s87
      %p89 = scmp.eq.s32.totalorder %s23, 0
      %p90 = por %p88, %p89
      %s92 = sadd.s32 %s91, 1
      %p95 = scmp.eq.s32.totalorder %s17, 1
      %p96 = scmp.ne.s32.totalorder %s91, %s93
      %p97 = scmp.eq.s32.totalorder %s17, 0
      %p98 = por %p96, %p97
      %p99 = scmp.ne.s32.totalorder %s91, %s93
      %p100 = scmp.eq.s32.totalorder %s22, 1
      %p101 = por %p99, %p100
      %p102 = scmp.ne.s32.totalorder %s93, %s94
      %p103 = scmp.eq.s32.totalorder %s22, 0
      %p104 = por %p102, %p103
      %p105 = scmp.ne.s32.totalorder %s93, %s94
      %p106 = scmp.eq.s32.totalorder %s23, 1
      %p107 = por %p105, %p106
      %p109 = scmp.ne.s32.totalorder %s94, %s108
      %p110 = scmp.eq.s32.totalorder %s23, 0
      %p111 = por %p109, %p110
      %s113 = sadd.s32 %s112, 1
      %p116 = scmp.eq.s32.totalorder %s17, 1
      %p117 = scmp.ne.s32.totalorder %s112, %s114
      %p118 = scmp.eq.s32.totalorder %s17, 0
      %p119 = por %p117, %p118
      %p120 = scmp.ne.s32.totalorder %s112, %s114
      %p121 = scmp.eq.s32.totalorder %s22, 1
      %p122 = por %p120, %p121
      %p123 = scmp.ne.s32.totalorder %s114, %s115
      %p124 = scmp.eq.s32.totalorder %s22, 0
      %p125 = por %p123, %p124
      %p126 = scmp.ne.s32.totalorder %s114, %s115
      %p127 = scmp.eq.s32.totalorder %s23, 1
      %p128 = por %p126, %p127
      %p130 = scmp.ne.s32.totalorder %s115, %s129
      %p131 = scmp.eq.s32.totalorder %s23, 0
      %p132 = por %p130, %p131
      %s133 = ssub.s32 %s24, %s36
      %p134 = scmp.eq.s32.totalorder %s133, 0
      %s136 = sadd.s32 %s135, 1
      %s137 = scalar_select %p134, %s135, %s136
      %p140 = pneg %p134
      %p141 = scmp.eq.s32.totalorder %s17, 1
      %p142 = por %p140, %p141
      %p143 = scmp.ne.s32.totalorder %s135, %s138
      %p144 = scmp.eq.s32.totalorder %s17, 0
      %p145 = por %p143, %p144
      %p146 = scmp.ne.s32.totalorder %s135, %s138
      %p147 = scmp.eq.s32.totalorder %s22, 1
      %p148 = por %p146, %p147
      %p149 = scmp.ne.s32.totalorder %s138, %s139
      %p150 = scmp.eq.s32.totalorder %s22, 0
      %p151 = por %p149, %p150
      %p152 = scmp.ne.s32.totalorder %s138, %s139
      %p153 = scmp.eq.s32.totalorder %s23, 1
      %p154 = por %p152, %p153
      %p156 = scmp.ne.s32.totalorder %s139, %s155
      %p157 = scmp.eq.s32.totalorder %s23, 0
      %p158 = por %p156, %p157
      %p159 = scmp.le.s32.totalorder 1, %s17
      %p160 = scmp.lt.s32.totalorder %s17, 3
      %p161 = pnand %p159, %p160
      %p162 = pneg %p161
      // Predicated region
      $region9: #{tpu_custom_call.1} parent=5 // pred_check
        _
      $region10: #{tpu_custom_call.1} parent=5 // pred_check_branch
        %164 = sbr.rel (%p161) target = $region12
      $region11: #{tpu_custom_call.1} parent=5 // pred_region
        %s165 = ssub.s32 %s17, 1
        // Predicated region
        $region13: #{tpu_custom_call.1} parent=11 // pred_check
          %p166 = pneg %p83
        $region14: #{tpu_custom_call.1} parent=11 // pred_check_branch
          %168 = sbr.rel (%p166) target = $region16
        $region15: #{tpu_custom_call.1} parent=11 // pred_region
          %s169 = smul.u32 32, %s27
          %s171 = ssub.s32 4096, 4096
          %172 = vsyncadd [#allocation7], %s171
          %s173 = smul.addr %s169, 128
          %s174 = scalar_lea.hbm %s1, %s173
          %s175 = sshll.u32 [#allocation6], 4
          %s176 = int_to_ptr.vmem [resolvable:$true] %s175
          %181 = dma.hbm_to_vmem [thread:$0]  %s174, 4096, %s176, [#allocation7], 128, 128, 8
        $region16: #{tpu_custom_call.1} parent=11 // pred_fallthru
          _
        // Predicated region
        $region17: #{tpu_custom_call.1} parent=11 // pred_check
          %p182 = pneg %p104
        $region18: #{tpu_custom_call.1} parent=11 // pred_check_branch
          %184 = sbr.rel (%p182) target = $region20
        $region19: #{tpu_custom_call.1} parent=11 // pred_region
          %s186 = ssub.s32 2048, 2048
          %187 = vsyncadd [#allocation7], %s186
          %s188 = sshll.u32 [#allocation8], 4
          %s189 = int_to_ptr.vmem [resolvable:$true] %s188
          %194 = dma.hbm_to_vmem [thread:$0]  %s2, 2048, %s189, [#allocation7], 128, 128, 8
        $region20: #{tpu_custom_call.1} parent=11 // pred_fallthru
          _
        // Predicated region
        $region21: #{tpu_custom_call.1} parent=11 // pred_check
          %p195 = pneg %p125
        $region22: #{tpu_custom_call.1} parent=11 // pred_check_branch
          %197 = sbr.rel (%p195) target = $region24
        $region23: #{tpu_custom_call.1} parent=11 // pred_region
          _
        $region24: #{tpu_custom_call.1} parent=11 // pred_fallthru
          _
      $region12: #{tpu_custom_call.1} parent=5 // pred_fallthru
        _
      %p198 = scmp.lt.s32.totalorder %s17, 2
      // Predicated region
      $region25: #{tpu_custom_call.1} parent=5 // pred_check
        %p199 = pneg %p198
      $region26: #{tpu_custom_call.1} parent=5 // pred_check_branch
        %201 = sbr.rel (%p199) target = $region28
      $region27: #{tpu_custom_call.1} parent=5 // pred_region
        // Predicated region
        $region29: #{tpu_custom_call.1} parent=27 // pred_check
          %p202 = pneg %p51
        $region30: #{tpu_custom_call.1} parent=27 // pred_check_branch
          %204 = sbr.rel (%p202) target = $region32
        $region31: #{tpu_custom_call.1} parent=27 // pred_region
          %s205 = sand.u32 %s41, 1
          %s206 = scalar_lea.sflag [#allocation4], %s205
          %s207 = sand.u32 %s41, 1
          %s208 = smul.addr %s207, 256
          %s209 = scalar_lea.vmem [#allocation3], %s208
          %s210 = smul.u32 16, %s24
          %s211 = smul.u32 2, %s25
          %s213 = ssub.s32 4096, 4096
          %214 = vsyncadd %s206, %s213
          %s215 = smul.addr %s210, 2
          %s216 = sadd.s32 %s211, %s215
          %s217 = smul.addr %s216, 128
          %s218 = scalar_lea.hbm %s0, %s217
          %s219 = sshll.u32 %s209, 4
          %s220 = int_to_ptr.vmem [resolvable:$true] %s219
          %225 = dma.hbm_to_vmem [thread:$0]  %s218, 4096, %s220, %s206, 256, 256, 16
        $region32: #{tpu_custom_call.1} parent=27 // pred_fallthru
          _
      $region28: #{tpu_custom_call.1} parent=5 // pred_fallthru
        _
      %p226 = scmp.le.s32.totalorder 1, %s17
      %p227 = scmp.lt.s32.totalorder %s17, 3
      %p228 = pnand %p226, %p227
      %p229 = pneg %p228
      // Predicated region
      $region33: #{tpu_custom_call.1} parent=5 // pred_check
        _
      $region34: #{tpu_custom_call.1} parent=5 // pred_check_branch
        %231 = sbr.rel (%p228) target = $region36
      $region35: #{tpu_custom_call.1} parent=5 // pred_region
        %s232 = ssub.s32 %s17, 1
        %s233 = sand.u32 %s44, 1
        %s234 = scalar_lea.sflag [#allocation4], %s233
        %s235 = sand.u32 %s44, 1
        %s236 = smul.addr %s235, 256
        %s237 = scalar_lea.vmem [#allocation3], %s236
        // Predicated region
        $region37: #{tpu_custom_call.1} parent=35 // pred_check
          %p238 = pneg %p57
        $region38: #{tpu_custom_call.1} parent=35 // pred_check_branch
          %240 = sbr.rel (%p238) target = $region40
        $region39: #{tpu_custom_call.1} parent=35 // pred_region
          %241 = dma.done %s234, 4096
        $region40: #{tpu_custom_call.1} parent=35 // pred_fallthru
          _
        // Predicated region
        $region41: #{tpu_custom_call.1} parent=35 // pred_check
          %p242 = pneg %p83
        $region42: #{tpu_custom_call.1} parent=35 // pred_check_branch
          %244 = sbr.rel (%p242) target = $region44
        $region43: #{tpu_custom_call.1} parent=35 // pred_region
          %245 = dma.done [#allocation7], 4096
        $region44: #{tpu_custom_call.1} parent=35 // pred_fallthru
          _
        // Predicated region
        $region45: #{tpu_custom_call.1} parent=35 // pred_check
          %p246 = pneg %p104
        $region46: #{tpu_custom_call.1} parent=35 // pred_check_branch
          %248 = sbr.rel (%p246) target = $region48
        $region47: #{tpu_custom_call.1} parent=35 // pred_region
          %249 = dma.done [#allocation7], 2048
        $region48: #{tpu_custom_call.1} parent=35 // pred_fallthru
          _
        %s250 = sand.u32 %s44, 1
        %s251 = scalar_lea.sflag [#allocation4], %s250
        %s252 = sand.u32 %s44, 1
        %s253 = smul.addr %s252, 256
        %s254 = scalar_lea.vmem [#allocation3], %s253
        %p255 = pneg %p57
        %p256 = pneg %p54
        %p257 = pneg %p83
        %p258 = pneg %p80
        %p259 = pneg %p104
        %p260 = pneg %p101
        %p261 = pneg %p125
        %p262 = pneg %p122
        %p263 = pneg %p151
        %p264 = pneg %p148
        %s265 = sand.u32 %s138, 1
        %s266 = scalar_lea.sflag [#allocation5], %s265
        %s267 = sand.u32 %s138, 1
        %s268 = smul.addr %s267, 128
        %s269 = scalar_lea.vmem [#allocation9], %s268
        %s270 = smul.u32 16, %s26
        %s271 = smul.u32 2, %s27
        %s272 = smul.u32 32, %s27
        %s273 = smul.u32 16, %s26
        %p275 = scmp.eq.s32.totalorder %s27, 0
        // Predicated region
        $region49: #{tpu_custom_call.1} parent=35 // pred_check
          %p276 = pneg %p275
        $region50: #{tpu_custom_call.1} parent=35 // pred_check_branch
          %278 = sbr.rel (%p276) target = $region52
        $region51: #{tpu_custom_call.1} parent=35 // pred_region
          %279 = vst [vmem:[#allocation2] sm:$0xff] 0.0
          %280 = vst [vmem:[#allocation2 + $0x8] sm:$0xff] 0.0
          %281 = vst [vmem:[#allocation2 + $0x10] sm:$0xff] 0.0
          %282 = vst [vmem:[#allocation2 + $0x18] sm:$0xff] 0.0
          %283 = vst [vmem:[#allocation2 + $0x20] sm:$0xff] 0.0
          %284 = vst [vmem:[#allocation2 + $0x28] sm:$0xff] 0.0
          %285 = vst [vmem:[#allocation2 + $0x30] sm:$0xff] 0.0
          %286 = vst [vmem:[#allocation2 + $0x38] sm:$0xff] 0.0
          %287 = vst [vmem:[#allocation2 + $0x40] sm:$0xff] 0.0
          %288 = vst [vmem:[#allocation2 + $0x48] sm:$0xff] 0.0
          %289 = vst [vmem:[#allocation2 + $0x50] sm:$0xff] 0.0
          %290 = vst [vmem:[#allocation2 + $0x58] sm:$0xff] 0.0
          %291 = vst [vmem:[#allocation2 + $0x60] sm:$0xff] 0.0
          %292 = vst [vmem:[#allocation2 + $0x68] sm:$0xff] 0.0
          %293 = vst [vmem:[#allocation2 + $0x70] sm:$0xff] 0.0
          %294 = vst [vmem:[#allocation2 + $0x78] sm:$0xff] 0.0
        $region52: #{tpu_custom_call.1} parent=35 // pred_fallthru
          _
        %v295 = vld [vmem:[#allocation2] sm:$0xff]
        %v296 = vld [vmem:[#allocation2 + $0x8] sm:$0xff]
        %v297 = vld [vmem:[#allocation2 + $0x10] sm:$0xff]
        %v298 = vld [vmem:[#allocation2 + $0x18] sm:$0xff]
        %v299 = vld [vmem:[#allocation2 + $0x20] sm:$0xff]
        %v300 = vld [vmem:[#allocation2 + $0x28] sm:$0xff]
        %v301 = vld [vmem:[#allocation2 + $0x30] sm:$0xff]
        %v302 = vld [vmem:[#allocation2 + $0x38] sm:$0xff]
        %v303 = vld [vmem:[#allocation2 + $0x40] sm:$0xff]
        %v304 = vld [vmem:[#allocation2 + $0x48] sm:$0xff]
        %v305 = vld [vmem:[#allocation2 + $0x50] sm:$0xff]
        %v306 = vld [vmem:[#allocation2 + $0x58] sm:$0xff]
        %v307 = vld [vmem:[#allocation2 + $0x60] sm:$0xff]
        %v308 = vld [vmem:[#allocation2 + $0x68] sm:$0xff]
        %v309 = vld [vmem:[#allocation2 + $0x70] sm:$0xff]
        %v310 = vld [vmem:[#allocation2 + $0x78] sm:$0xff]
        %v311 = vld [vmem:[%s237] sm:$0xff]
        %v312 = vld [vmem:[%s237 + $0x8] sm:$0xff]
        %v313 = vld [vmem:[%s237 + $0x10] sm:$0xff]
        %v314 = vld [vmem:[%s237 + $0x18] sm:$0xff]
        %v315 = vld [vmem:[%s237 + $0x20] sm:$0xff]
        %v316 = vld [vmem:[%s237 + $0x28] sm:$0xff]
        %v317 = vld [vmem:[%s237 + $0x30] sm:$0xff]
        %v318 = vld [vmem:[%s237 + $0x38] sm:$0xff]
        %v319 = vld [vmem:[%s237 + $0x40] sm:$0xff]
        %v320 = vld [vmem:[%s237 + $0x48] sm:$0xff]
        %v321 = vld [vmem:[%s237 + $0x50] sm:$0xff]
        %v322 = vld [vmem:[%s237 + $0x58] sm:$0xff]
        %v323 = vld [vmem:[%s237 + $0x60] sm:$0xff]
        %v324 = vld [vmem:[%s237 + $0x68] sm:$0xff]
        %v325 = vld [vmem:[%s237 + $0x70] sm:$0xff]
        %v326 = vld [vmem:[%s237 + $0x78] sm:$0xff]
        %v327 = vld [vmem:[%s237 + $0x80] sm:$0xff]
        %v328 = vld [vmem:[%s237 + $0x88] sm:$0xff]
        %v329 = vld [vmem:[%s237 + $0x90] sm:$0xff]
        %v330 = vld [vmem:[%s237 + $0x98] sm:$0xff]
        %v331 = vld [vmem:[%s237 + $0xa0] sm:$0xff]
        %v332 = vld [vmem:[%s237 + $0xa8] sm:$0xff]
        %v333 = vld [vmem:[%s237 + $0xb0] sm:$0xff]
        %v334 = vld [vmem:[%s237 + $0xb8] sm:$0xff]
        %v335 = vld [vmem:[%s237 + $0xc0] sm:$0xff]
        %v336 = vld [vmem:[%s237 + $0xc8] sm:$0xff]
        %v337 = vld [vmem:[%s237 + $0xd0] sm:$0xff]
        %v338 = vld [vmem:[%s237 + $0xd8] sm:$0xff]
        %v339 = vld [vmem:[%s237 + $0xe0] sm:$0xff]
        %v340 = vld [vmem:[%s237 + $0xe8] sm:$0xff]
        %v341 = vld [vmem:[%s237 + $0xf0] sm:$0xff]
        %v342 = vld [vmem:[%s237 + $0xf8] sm:$0xff]
        %v343 = vpack.c.bf16 %v313, %v311
        %v344 = vpack.c.bf16 %v314, %v312
        %v345 = vpack.c.bf16 %v317, %v315
        %v346 = vpack.c.bf16 %v318, %v316
        %v347 = vpack.c.bf16 %v321, %v319
        %v348 = vpack.c.bf16 %v322, %v320
        %v349 = vpack.c.bf16 %v325, %v323
        %v350 = vpack.c.bf16 %v326, %v324
        %v351 = vpack.c.bf16 %v329, %v327
        %v352 = vpack.c.bf16 %v330, %v328
        %v353 = vpack.c.bf16 %v333, %v331
        %v354 = vpack.c.bf16 %v334, %v332
        %v355 = vpack.c.bf16 %v337, %v335
        %v356 = vpack.c.bf16 %v338, %v336
        %v357 = vpack.c.bf16 %v341, %v339
        %v358 = vpack.c.bf16 %v342, %v340
        %v359 = vld [vmem:[#allocation6] sm:$0xff]
        %v360 = vld [vmem:[#allocation6 + $0x8] sm:$0xff]
        %v361 = vld [vmem:[#allocation6 + $0x10] sm:$0xff]
        %v362 = vld [vmem:[#allocation6 + $0x18] sm:$0xff]
        %v363 = vld [vmem:[#allocation6 + $0x20] sm:$0xff]
        %v364 = vld [vmem:[#allocation6 + $0x28] sm:$0xff]
        %v365 = vld [vmem:[#allocation6 + $0x30] sm:$0xff]
        %v366 = vld [vmem:[#allocation6 + $0x38] sm:$0xff]
        %v367 = vld [vmem:[#allocation6 + $0x40] sm:$0xff]
        %v368 = vld [vmem:[#allocation6 + $0x48] sm:$0xff]
        %v369 = vld [vmem:[#allocation6 + $0x50] sm:$0xff]
        %v370 = vld [vmem:[#allocation6 + $0x58] sm:$0xff]
        %v371 = vld [vmem:[#allocation6 + $0x60] sm:$0xff]
        %v372 = vld [vmem:[#allocation6 + $0x68] sm:$0xff]
        %v373 = vld [vmem:[#allocation6 + $0x70] sm:$0xff]
        %v374 = vld [vmem:[#allocation6 + $0x78] sm:$0xff]
        %v375 = vld [vmem:[#allocation6 + $0x80] sm:$0xff]
        %v376 = vld [vmem:[#allocation6 + $0x88] sm:$0xff]
        %v377 = vld [vmem:[#allocation6 + $0x90] sm:$0xff]
        %v378 = vld [vmem:[#allocation6 + $0x98] sm:$0xff]
        %v379 = vld [vmem:[#allocation6 + $0xa0] sm:$0xff]
        %v380 = vld [vmem:[#allocation6 + $0xa8] sm:$0xff]
        %v381 = vld [vmem:[#allocation6 + $0xb0] sm:$0xff]
        %v382 = vld [vmem:[#allocation6 + $0xb8] sm:$0xff]
        %v383 = vld [vmem:[#allocation6 + $0xc0] sm:$0xff]
        %v384 = vld [vmem:[#allocation6 + $0xc8] sm:$0xff]
        %v385 = vld [vmem:[#allocation6 + $0xd0] sm:$0xff]
        %v386 = vld [vmem:[#allocation6 + $0xd8] sm:$0xff]
        %v387 = vld [vmem:[#allocation6 + $0xe0] sm:$0xff]
        %v388 = vld [vmem:[#allocation6 + $0xe8] sm:$0xff]
        %v389 = vld [vmem:[#allocation6 + $0xf0] sm:$0xff]
        %v390 = vld [vmem:[#allocation6 + $0xf8] sm:$0xff]
        %v391 = vpack.c.bf16 %v360, %v359
        %v392 = vpack.c.bf16 %v362, %v361
        %v393 = vpack.c.bf16 %v364, %v363
        %v394 = vpack.c.bf16 %v366, %v365
        %v395 = vpack.c.bf16 %v368, %v367
        %v396 = vpack.c.bf16 %v370, %v369
        %v397 = vpack.c.bf16 %v372, %v371
        %v398 = vpack.c.bf16 %v374, %v373
        %v399 = vpack.c.bf16 %v376, %v375
        %v400 = vpack.c.bf16 %v378, %v377
        %v401 = vpack.c.bf16 %v380, %v379
        %v402 = vpack.c.bf16 %v382, %v381
        %v403 = vpack.c.bf16 %v384, %v383
        %v404 = vpack.c.bf16 %v386, %v385
        %v405 = vpack.c.bf16 %v388, %v387
        %v406 = vpack.c.bf16 %v390, %v389
        %407 = vmatprep.subr.bf16.mxu0 0
        %408 = vmatpush1.bf16.msra.mxu0 %v391
        %409 = vmatprep.subr.bf16.mxu0 0
        %410 = vmatpush1.bf16.msra.mxu0 %v392
        %411 = vmatprep.subr.bf16.mxu0 0
        %412 = vmatpush1.bf16.msra.mxu0 %v393
        %413 = vmatprep.subr.bf16.mxu0 0
        %414 = vmatpush1.bf16.msra.mxu0 %v394
        %415 = vmatprep.subr.bf16.mxu0 0
        %416 = vmatpush1.bf16.msra.mxu0 %v395
        %417 = vmatprep.subr.bf16.mxu0 0
        %418 = vmatpush1.bf16.msra.mxu0 %v396
        %419 = vmatprep.subr.bf16.mxu0 0
        %420 = vmatpush1.bf16.msra.mxu0 %v397
        %421 = vmatprep.subr.bf16.mxu0 0
        %422 = vmatpush1.bf16.msra.mxu0 %v398
        %423 = vmatprep.subr.bf16.mxu0 0
        %424 = vmatpush1.bf16.msra.mxu0 %v399
        %425 = vmatprep.subr.bf16.mxu0 0
        %426 = vmatpush1.bf16.msra.mxu0 %v400
        %427 = vmatprep.subr.bf16.mxu0 0
        %428 = vmatpush1.bf16.msra.mxu0 %v401
        %429 = vmatprep.subr.bf16.mxu0 0
        %430 = vmatpush1.bf16.msra.mxu0 %v402
        %431 = vmatprep.subr.bf16.mxu0 0
        %432 = vmatpush1.bf16.msra.mxu0 %v403
        %433 = vmatprep.subr.bf16.mxu0 0
        %434 = vmatpush1.bf16.msra.mxu0 %v404
        %435 = vmatprep.subr.bf16.mxu0 0
        %436 = vmatpush1.bf16.msra.mxu0 %v405
        %437 = vmatprep.subr.bf16.mxu0 0
        %438 = vmatpush1.bf16.msra.mxu0 %v406
        %439 = vmatprep.mubr.bf16.mxu0 %v344
        %440 = vmatmul.mubr.bf16.gmra.mrb[0].mxu0 %v343
        %v441 = vpop.f32.mrb[0].mxu0
        %v442 = vadd.f32 0.0, %v441
        %v443 = vpop.f32.mrb[0].mxu0
        %v444 = vpop.f32.mrb[0].mxu0
        %v445 = vadd.f32 0.0, %v444
        %v446 = vpop.f32.mrb[0].mxu0
        %447 = vmatprep.mubr.bf16.mxu0 %v346
        %448 = vmatmul.mubr.bf16.gmra.mrb[0].mxu0 %v345
        %v449 = vpop.f32.mrb[0].mxu0
        %v450 = vadd.f32 0.0, %v449
        %v451 = vpop.f32.mrb[0].mxu0
        %v452 = vpop.f32.mrb[0].mxu0
        %v453 = vadd.f32 0.0, %v452
        %v454 = vpop.f32.mrb[0].mxu0
        %455 = vmatprep.mubr.bf16.mxu0 %v348
        %456 = vmatmul.mubr.bf16.gmra.mrb[0].mxu0 %v347
        %v457 = vpop.f32.mrb[0].mxu0
        %v458 = vadd.f32 0.0, %v457
        %v459 = vpop.f32.mrb[0].mxu0
        %v460 = vpop.f32.mrb[0].mxu0
        %v461 = vadd.f32 0.0, %v460
        %v462 = vpop.f32.mrb[0].mxu0
        %463 = vmatprep.mubr.bf16.mxu0 %v350
        %464 = vmatmul.mubr.bf16.gmra.mrb[0].mxu0 %v349
        %v465 = vpop.f32.mrb[0].mxu0
        %v466 = vadd.f32 0.0, %v465
        %v467 = vpop.f32.mrb[0].mxu0
        %v468 = vpop.f32.mrb[0].mxu0
        %v469 = vadd.f32 0.0, %v468
        %v470 = vpop.f32.mrb[0].mxu0
        %471 = vmatprep.mubr.bf16.mxu0 %v352
        %472 = vmatmul.mubr.bf16.gmra.mrb[0].mxu0 %v351
        %v473 = vpop.f32.mrb[0].mxu0
        %v474 = vadd.f32 0.0, %v473
        %v475 = vpop.f32.mrb[0].mxu0
        %v476 = vpop.f32.mrb[0].mxu0
        %v477 = vadd.f32 0.0, %v476
        %v478 = vpop.f32.mrb[0].mxu0
        %479 = vmatprep.mubr.bf16.mxu0 %v354
        %480 = vmatmul.mubr.bf16.gmra.mrb[0].mxu0 %v353
        %v481 = vpop.f32.mrb[0].mxu0
        %v482 = vadd.f32 0.0, %v481
        %v483 = vpop.f32.mrb[0].mxu0
        %v484 = vpop.f32.mrb[0].mxu0
        %v485 = vadd.f32 0.0, %v484
        %v486 = vpop.f32.mrb[0].mxu0
        %487 = vmatprep.mubr.bf16.mxu0 %v356
        %488 = vmatmul.mubr.bf16.gmra.mrb[0].mxu0 %v355
        %v489 = vpop.f32.mrb[0].mxu0
        %v490 = vadd.f32 0.0, %v489
        %v491 = vpop.f32.mrb[0].mxu0
        %v492 = vpop.f32.mrb[0].mxu0
        %v493 = vadd.f32 0.0, %v492
        %v494 = vpop.f32.mrb[0].mxu0
        %495 = vmatprep.mubr.bf16.mxu0 %v358
        %496 = vmatmul.mubr.bf16.gmra.mrb[0].mxu0 %v357
        %v497 = vpop.f32.mrb[0].mxu0
        %v498 = vadd.f32 0.0, %v497
        %v499 = vpop.f32.mrb[0].mxu0
        %v500 = vpop.f32.mrb[0].mxu0
        %v501 = vadd.f32 0.0, %v500
        %v502 = vpop.f32.mrb[0].mxu0
        %503 = vdwg.mxu0
        %v504 = vadd.f32 %v295, %v442
        %v505 = vadd.f32 %v296, %v445
        %v506 = vadd.f32 %v297, %v450
        %v507 = vadd.f32 %v298, %v453
        %v508 = vadd.f32 %v299, %v458
        %v509 = vadd.f32 %v300, %v461
        %v510 = vadd.f32 %v301, %v466
        %v511 = vadd.f32 %v302, %v469
        %v512 = vadd.f32 %v303, %v474
        %v513 = vadd.f32 %v304, %v477
        %v514 = vadd.f32 %v305, %v482
        %v515 = vadd.f32 %v306, %v485
        %v516 = vadd.f32 %v307, %v490
        %v517 = vadd.f32 %v308, %v493
        %v518 = vadd.f32 %v309, %v498
        %v519 = vadd.f32 %v310, %v501
        %520 = vst [vmem:[#allocation2] sm:$0xff] %v504
        %521 = vst [vmem:[#allocation2 + $0x8] sm:$0xff] %v505
        %522 = vst [vmem:[#allocation2 + $0x10] sm:$0xff] %v506
        %523 = vst [vmem:[#allocation2 + $0x18] sm:$0xff] %v507
        %524 = vst [vmem:[#allocation2 + $0x20] sm:$0xff] %v508
        %525 = vst [vmem:[#allocation2 + $0x28] sm:$0xff] %v509
        %526 = vst [vmem:[#allocation2 + $0x30] sm:$0xff] %v510
        %527 = vst [vmem:[#allocation2 + $0x38] sm:$0xff] %v511
        %528 = vst [vmem:[#allocation2 + $0x40] sm:$0xff] %v512
        %529 = vst [vmem:[#allocation2 + $0x48] sm:$0xff] %v513
        %530 = vst [vmem:[#allocation2 + $0x50] sm:$0xff] %v514
        %531 = vst [vmem:[#allocation2 + $0x58] sm:$0xff] %v515
        %532 = vst [vmem:[#allocation2 + $0x60] sm:$0xff] %v516
        %533 = vst [vmem:[#allocation2 + $0x68] sm:$0xff] %v517
        %534 = vst [vmem:[#allocation2 + $0x70] sm:$0xff] %v518
        %535 = vst [vmem:[#allocation2 + $0x78] sm:$0xff] %v519
        // Predicated region
        $region53: #{tpu_custom_call.1} parent=35 // pred_check
          %p536 = pneg %p275
        $region54: #{tpu_custom_call.1} parent=35 // pred_check_branch
          %538 = sbr.rel (%p536) target = $region56
        $region55: #{tpu_custom_call.1} parent=35 // pred_region
          %v539 = vld [vmem:[#allocation2] sm:$0xff]
          %v540 = vld [vmem:[#allocation2 + $0x8] sm:$0xff]
          %v541 = vld [vmem:[#allocation2 + $0x10] sm:$0xff]
          %v542 = vld [vmem:[#allocation2 + $0x18] sm:$0xff]
          %v543 = vld [vmem:[#allocation2 + $0x20] sm:$0xff]
          %v544 = vld [vmem:[#allocation2 + $0x28] sm:$0xff]
          %v545 = vld [vmem:[#allocation2 + $0x30] sm:$0xff]
          %v546 = vld [vmem:[#allocation2 + $0x38] sm:$0xff]
          %v547 = vld [vmem:[#allocation2 + $0x40] sm:$0xff]
          %v548 = vld [vmem:[#allocation2 + $0x48] sm:$0xff]
          %v549 = vld [vmem:[#allocation2 + $0x50] sm:$0xff]
          %v550 = vld [vmem:[#allocation2 + $0x58] sm:$0xff]
          %v551 = vld [vmem:[#allocation2 + $0x60] sm:$0xff]
          %v552 = vld [vmem:[#allocation2 + $0x68] sm:$0xff]
          %v553 = vld [vmem:[#allocation2 + $0x70] sm:$0xff]
          %v554 = vld [vmem:[#allocation2 + $0x78] sm:$0xff]
          %v555 = vpack.c.bf16 %v540, %v539
          %v556 = vpack.c.bf16 %v542, %v541
          %v557 = vpack.c.bf16 %v544, %v543
          %v558 = vpack.c.bf16 %v546, %v545
          %v559 = vpack.c.bf16 %v548, %v547
          %v560 = vpack.c.bf16 %v550, %v549
          %v561 = vpack.c.bf16 %v552, %v551
          %v562 = vpack.c.bf16 %v554, %v553
          %v563 = vld [vmem:[#allocation8] sm:$0xff]
          %v564 = vld [vmem:[#allocation8 + $0x8] sm:$0xff]
          %v565 = vld [vmem:[#allocation8 + $0x10] sm:$0xff]
          %v566 = vld [vmem:[#allocation8 + $0x18] sm:$0xff]
          %v567 = vld [vmem:[#allocation8 + $0x20] sm:$0xff]
          %v568 = vld [vmem:[#allocation8 + $0x28] sm:$0xff]
          %v569 = vld [vmem:[#allocation8 + $0x30] sm:$0xff]
          %v570 = vld [vmem:[#allocation8 + $0x38] sm:$0xff]
          %v571 = vld [vmem:[#allocation8 + $0x40] sm:$0xff]
          %v572 = vld [vmem:[#allocation8 + $0x48] sm:$0xff]
          %v573 = vld [vmem:[#allocation8 + $0x50] sm:$0xff]
          %v574 = vld [vmem:[#allocation8 + $0x58] sm:$0xff]
          %v575 = vld [vmem:[#allocation8 + $0x60] sm:$0xff]
          %v576 = vld [vmem:[#allocation8 + $0x68] sm:$0xff]
          %v577 = vld [vmem:[#allocation8 + $0x70] sm:$0xff]
          %v578 = vld [vmem:[#allocation8 + $0x78] sm:$0xff]
          %v579 = vpack.c.bf16 %v564, %v563
          %v580 = vpack.c.bf16 %v566, %v565
          %v581 = vpack.c.bf16 %v568, %v567
          %v582 = vpack.c.bf16 %v570, %v569
          %v583 = vpack.c.bf16 %v572, %v571
          %v584 = vpack.c.bf16 %v574, %v573
          %v585 = vpack.c.bf16 %v576, %v575
          %v586 = vpack.c.bf16 %v578, %v577
          %v587 = vld [vmem:[%s3] sm:$0x1]
          %v589 = vlaneseq
          %v590 = vshrl.u32 %v589, 7
          %v591 = vsub.s32 0, %v590
          %v592 = vrot.slane %v587, %v591
          %594 = vmatprep.subr.bf16.mxu0 0
          %595 = vmatpush1.bf16.msra.mxu0 %v579
          %596 = vmatprep.subr.bf16.mxu0 0
          %597 = vmatpush1.bf16.msra.mxu0 %v580
          %598 = vmatprep.subr.bf16.mxu0 0
          %599 = vmatpush1.bf16.msra.mxu0 %v581
          %600 = vmatprep.subr.bf16.mxu0 0
          %601 = vmatpush1.bf16.msra.mxu0 %v582
          %602 = vmatprep.subr.bf16.mxu0 0
          %603 = vmatpush1.bf16.msra.mxu0 %v583
          %604 = vmatprep.subr.bf16.mxu0 0
          %605 = vmatpush1.bf16.msra.mxu0 %v584
          %606 = vmatprep.subr.bf16.mxu0 0
          %607 = vmatpush1.bf16.msra.mxu0 %v585
          %608 = vmatprep.subr.bf16.mxu0 0
          %609 = vmatpush1.bf16.msra.mxu0 %v586
          %610 = vmatprep.subr.bf16.mxu0 0
          %611 = vmatpush1.bf16.msra.mxu0 0
          %612 = vmatprep.subr.bf16.mxu0 0
          %613 = vmatpush1.bf16.msra.mxu0 0
          %614 = vmatprep.subr.bf16.mxu0 0
          %615 = vmatpush1.bf16.msra.mxu0 0
          %616 = vmatprep.subr.bf16.mxu0 0
          %617 = vmatpush1.bf16.msra.mxu0 0
          %618 = vmatprep.subr.bf16.mxu0 0
          %619 = vmatpush1.bf16.msra.mxu0 0
          %620 = vmatprep.subr.bf16.mxu0 0
          %621 = vmatpush1.bf16.msra.mxu0 0
          %622 = vmatprep.subr.bf16.mxu0 0
          %623 = vmatpush1.bf16.msra.mxu0 0
          %624 = vmatprep.subr.bf16.mxu0 0
          %625 = vmatpush1.bf16.msra.mxu0 0
          %626 = vmatprep.mubr.bf16.mxu0 0
          %627 = vmatmul.mubr.bf16.gmra.mrb[0].mxu0 %v555
          %v628 = vpop.f32.mrb[0].mxu0
          %v629 = vadd.f32 %v592, %v628
          %v630 = vpop.f32.mrb[0].mxu0
          %v631 = vpop.f32.mrb[0].mxu0
          %v632 = vadd.f32 %v592, %v631
          %v633 = vpop.f32.mrb[0].mxu0
          %634 = vmatprep.mubr.bf16.mxu0 0
          %635 = vmatmul.mubr.bf16.gmra.mrb[0].mxu0 %v556
          %v636 = vpop.f32.mrb[0].mxu0
          %v637 = vadd.f32 %v592, %v636
          %v638 = vpop.f32.mrb[0].mxu0
          %v639 = vpop.f32.mrb[0].mxu0
          %v640 = vadd.f32 %v592, %v639
          %v641 = vpop.f32.mrb[0].mxu0
          %642 = vmatprep.mubr.bf16.mxu0 0
          %643 = vmatmul.mubr.bf16.gmra.mrb[0].mxu0 %v557
          %v644 = vpop.f32.mrb[0].mxu0
          %v645 = vadd.f32 %v592, %v644
          %v646 = vpop.f32.mrb[0].mxu0
          %v647 = vpop.f32.mrb[0].mxu0
          %v648 = vadd.f32 %v592, %v647
          %v649 = vpop.f32.mrb[0].mxu0
          %650 = vmatprep.mubr.bf16.mxu0 0
          %651 = vmatmul.mubr.bf16.gmra.mrb[0].mxu0 %v558
          %v652 = vpop.f32.mrb[0].mxu0
          %v653 = vadd.f32 %v592, %v652
          %v654 = vpop.f32.mrb[0].mxu0
          %v655 = vpop.f32.mrb[0].mxu0
          %v656 = vadd.f32 %v592, %v655
          %v657 = vpop.f32.mrb[0].mxu0
          %658 = vmatprep.mubr.bf16.mxu0 0
          %659 = vmatmul.mubr.bf16.gmra.mrb[0].mxu0 %v559
          %v660 = vpop.f32.mrb[0].mxu0
          %v661 = vadd.f32 %v592, %v660
          %v662 = vpop.f32.mrb[0].mxu0
          %v663 = vpop.f32.mrb[0].mxu0
          %v664 = vadd.f32 %v592, %v663
          %v665 = vpop.f32.mrb[0].mxu0
          %666 = vmatprep.mubr.bf16.mxu0 0
          %667 = vmatmul.mubr.bf16.gmra.mrb[0].mxu0 %v560
          %v668 = vpop.f32.mrb[0].mxu0
          %v669 = vadd.f32 %v592, %v668
          %v670 = vpop.f32.mrb[0].mxu0
          %v671 = vpop.f32.mrb[0].mxu0
          %v672 = vadd.f32 %v592, %v671
          %v673 = vpop.f32.mrb[0].mxu0
          %674 = vmatprep.mubr.bf16.mxu0 0
          %675 = vmatmul.mubr.bf16.gmra.mrb[0].mxu0 %v561
          %v676 = vpop.f32.mrb[0].mxu0
          %v677 = vadd.f32 %v592, %v676
          %v678 = vpop.f32.mrb[0].mxu0
          %v679 = vpop.f32.mrb[0].mxu0
          %v680 = vadd.f32 %v592, %v679
          %v681 = vpop.f32.mrb[0].mxu0
          %682 = vmatprep.mubr.bf16.mxu0 0
          %683 = vmatmul.mubr.bf16.gmra.mrb[0].mxu0 %v562
          %v684 = vpop.f32.mrb[0].mxu0
          %v685 = vadd.f32 %v592, %v684
          %v686 = vpop.f32.mrb[0].mxu0
          %v687 = vpop.f32.mrb[0].mxu0
          %v688 = vadd.f32 %v592, %v687
          %v689 = vpop.f32.mrb[0].mxu0
          %690 = vdwg.mxu0
          %691 = vst [vmem:[%s269] sm:$0xff] %v629
          %692 = vst [vmem:[%s269 + $0x8] sm:$0xff] %v632
          %693 = vst [vmem:[%s269 + $0x10] sm:$0xff] %v637
          %694 = vst [vmem:[%s269 + $0x18] sm:$0xff] %v640
          %695 = vst [vmem:[%s269 + $0x20] sm:$0xff] %v645
          %696 = vst [vmem:[%s269 + $0x28] sm:$0xff] %v648
          %697 = vst [vmem:[%s269 + $0x30] sm:$0xff] %v653
          %698 = vst [vmem:[%s269 + $0x38] sm:$0xff] %v656
          %699 = vst [vmem:[%s269 + $0x40] sm:$0xff] %v661
          %700 = vst [vmem:[%s269 + $0x48] sm:$0xff] %v664
          %701 = vst [vmem:[%s269 + $0x50] sm:$0xff] %v669
          %702 = vst [vmem:[%s269 + $0x58] sm:$0xff] %v672
          %703 = vst [vmem:[%s269 + $0x60] sm:$0xff] %v677
          %704 = vst [vmem:[%s269 + $0x68] sm:$0xff] %v680
          %705 = vst [vmem:[%s269 + $0x70] sm:$0xff] %v685
          %706 = vst [vmem:[%s269 + $0x78] sm:$0xff] %v688
        $region56: #{tpu_custom_call.1} parent=35 // pred_fallthru
          _
        %s707 = sand.u32 %s138, 1
        %s708 = scalar_lea.sflag [#allocation5], %s707
        %s709 = sand.u32 %s138, 1
        %s710 = smul.addr %s709, 128
        %s711 = scalar_lea.vmem [#allocation9], %s710
        // Predicated region
        $region57: #{tpu_custom_call.1} parent=35 // pred_check
          %p712 = pneg %p148
        $region58: #{tpu_custom_call.1} parent=35 // pred_check_branch
          %714 = sbr.rel (%p712) target = $region60
        $region59: #{tpu_custom_call.1} parent=35 // pred_region
          %s715 = smul.u32 16, %s26
          %s717 = ssub.s32 2048, 2048
          %718 = vsyncadd %s708, %s717
          %s719 = smul.addr %s715, 128
          %s720 = scalar_lea.hbm %s4, %s719
          %s721 = sshll.u32 %s711, 4
          %s722 = int_to_ptr.vmem [resolvable:$true] %s721
          %727 = dma.vmem_to_hbm [thread:$0]  %s722, 2048, %s720, %s708, 128, 128, 8
        $region60: #{tpu_custom_call.1} parent=35 // pred_fallthru
          _
      $region36: #{tpu_custom_call.1} parent=5 // pred_fallthru
        _
      %p728 = scmp.le.s32.totalorder 2, %s17
      // Predicated region
      $region61: #{tpu_custom_call.1} parent=5 // pred_check
        %p729 = pneg %p728
      $region62: #{tpu_custom_call.1} parent=5 // pred_check_branch
        %731 = sbr.rel (%p729) target = $region64
      $region63: #{tpu_custom_call.1} parent=5 // pred_region
        %s732 = ssub.s32 %s17, 2
        // Predicated region
        $region65: #{tpu_custom_call.1} parent=63 // pred_check
          %p733 = pneg %p154
        $region66: #{tpu_custom_call.1} parent=63 // pred_check_branch
          %735 = sbr.rel (%p733) target = $region68
        $region67: #{tpu_custom_call.1} parent=63 // pred_region
          %s736 = sand.u32 %s139, 1
          %s737 = scalar_lea.sflag [#allocation5], %s736
          %s738 = sand.u32 %s139, 1
          %s739 = smul.addr %s738, 128
          %s740 = scalar_lea.vmem [#allocation9], %s739
          %741 = dma.done %s737, 2048
        $region68: #{tpu_custom_call.1} parent=63 // pred_fallthru
          _
      $region64: #{tpu_custom_call.1} parent=5 // pred_fallthru
        _
    $region6: #{tpu_custom_call.1} parent=1 // loop_footer
      %s21 = sadd.s32 1, %s17
    $region7: #{tpu_custom_call.1} parent=1 // loop_footer_branch
      %16 = sbr.rel target = $region3
    $region8: #{tpu_custom_call.1} parent=1 // loop_exit
      _
    %742 = vsyncpa [#allocation4], 1
    %s743 = scalar_lea.sflag [#allocation4], 1
    %744 = vsyncpa %s743, 1
    %745 = vsyncpa [#allocation7], 1
    %746 = vsyncpa [#allocation5], 1
    %s747 = scalar_lea.sflag [#allocation5], 1
    %748 = vsyncpa %s747, 1

</llo_original>
